<compile_context>
chip_gen: v7x
topology: tpu7x:2x2x1
jax: 0.10.0
libtpu: 0.0.40
codegen_flags: <defaults>
</compile_context>

<pallas_src>
import functools

import numpy as np
import jax
import jax.numpy as jnp
from jax.experimental import pallas as pl
from jax.experimental.pallas import tpu as pltpu

# RF2NA token count (20 aa + unk + mask + DNA/RNA tokens ...)
NAATOKENS = 46


def _masked_token_kernel(x_ref, w_ref, b_ref, o_ref, *, compute_dtype):
    """One (T, tm) output tile of the projection, already in permuted layout.

    x_ref: (1, tm, C)  activation tile in its HBM dtype (cast here, on the VPU)
    w_ref: (T, C)      full weight (compute_dtype), VMEM-resident across steps
    b_ref: (T, 1)      bias column (f32)
    o_ref: (1, T, tm)  output tile in the final (B, T, N*L) layout
    """
    x_tile = x_ref[0].astype(compute_dtype)            # in-kernel cast (no extra HBM pass)
    acc = jax.lax.dot_general(
        w_ref[...], x_tile,
        dimension_numbers=(((1,), (1,)), ((), ())),     # contract over C
        preferred_element_type=jnp.float32)             # (T, tm) f32 accumulate on MXU
    o_ref[0] = (acc + b_ref[...]).astype(o_ref.dtype)


def _default_row_tile():
    # v7x HBM is ~2.3x faster per TC than v6e while the ~0.35 us per-step
    # pipeline overhead is constant, so it needs a proportionally bigger tile.
    try:
        kind = jax.devices()[0].device_kind.lower()
    except Exception:
        return 2048
    return 8192 if "v7" in kind else 2048


@functools.partial(jax.jit, static_argnames=("tm", "compute_dtype", "out_dtype"))
def masked_token_network(x, weight, bias, *, tm=None,
                         compute_dtype=jnp.bfloat16, out_dtype=jnp.float32):
    """Pallas implementation of MaskedTokenNetwork.forward.

    Args:
      x:      (B, N, L, n_feat) activations (read in-place, cast in-kernel)
      weight: (NAATOKENS, n_feat)  -- PyTorch nn.Linear layout
      bias:   (NAATOKENS,)
      tm:     row tile along N*L (multiple of 128); None -> per-chip default
              (2048 on v5e/v6e, 8192 on v7x)
      compute_dtype: MXU operand dtype (bf16 default; accumulation stays f32)
      out_dtype: logits dtype. f32 matches the PyTorch module; pass bf16 to
                 halve the dominant output-write HBM stream if the consumer
                 (log_softmax / CE) upcasts anyway.
    Returns:
      logits: (B, NAATOKENS, N*L) in out_dtype
    """
    B, N, L, C = x.shape
    T = weight.shape[0]
    NL = N * L

    if tm is None:
        tm = _default_row_tile()

    # Full block for small N*L (block == array dim, so the (8,128) constraint
    # doesn't apply); otherwise a lane-aligned tile. A non-dividing tail tile
    # is handled by Pallas's built-in partial-block masking (garbage x rows
    # only feed masked-out output columns — no cross-column mixing).
    tm_eff = NL if NL < tm else tm

    # Keep enough ("parallel","parallel") grid steps to feed both v7x
    # TensorCores; harmless on single-TC v5e/v6e.
    MIN_STEPS = 4
    if NL > 256 and B * pl.cdiv(NL, tm_eff) < MIN_STEPS:
        per_batch = max(MIN_STEPS // max(B, 1), 2)
        tm_cap = max(256, ((pl.cdiv(NL, per_batch) + 127) // 128) * 128)
        tm_eff = min(tm_eff, tm_cap)

    grid = (B, pl.cdiv(NL, tm_eff))

    x3d = x.reshape(B, NL, C)                         # free reshape; NO dtype cast here
    w = weight.astype(compute_dtype)                  # (T, C), tiny, VMEM-resident
    b = bias.reshape(T, 1).astype(jnp.float32)        # bias column for (T, tm) tiles

    cost = pl.CostEstimate(
        flops=2 * B * NL * T * C,
        transcendentals=0,
        bytes_accessed=(x3d.size * x3d.dtype.itemsize
                        + w.size * w.dtype.itemsize
                        + b.size * b.dtype.itemsize
                        + B * T * NL * np.dtype(out_dtype).itemsize))

    out = pl.pallas_call(
        functools.partial(_masked_token_kernel, compute_dtype=compute_dtype),
        out_shape=jax.ShapeDtypeStruct((B, T, NL), out_dtype),
        grid_spec=pltpu.PrefetchScalarGridSpec(
            num_scalar_prefetch=0,
            grid=grid,
            in_specs=[
                pl.BlockSpec((1, tm_eff, C), lambda bi, j: (bi, j, 0)),  # x tile
                pl.BlockSpec((T, C), lambda bi, j: (0, 0)),              # full weight
                pl.BlockSpec((T, 1), lambda bi, j: (0, 0)),              # bias col
            ],
            out_specs=pl.BlockSpec((1, T, tm_eff), lambda bi, j: (bi, 0, j)),
        ),
        compiler_params=pltpu.CompilerParams(
            dimension_semantics=("parallel", "parallel"),  # shard across v7x TCs
        ),
        cost_estimate=cost,
    )(x3d, w, b)

    return out  # already (B, NAATOKENS, N*L); no wrapper transpose needed


if __name__ == "__main__":
    key = jax.random.PRNGKey(0)

    def ref_forward(x, weight, bias):
        B, N, L, _ = x.shape
        logits = jnp.einsum("bnlc,tc->bnlt", x, weight) + bias
        return jnp.transpose(logits, (0, 3, 1, 2)).reshape(B, NAATOKENS, N * L)

    # ---- Test 1: small shapes consistent with the module's forward ---------
    B, N, L, n_feat = 2, 4, 8, 32
    kx, kw, kb = jax.random.split(key, 3)
    x = jax.random.normal(kx, (B, N, L, n_feat), dtype=jnp.float32)
    # NOTE: the reference reset_parameter() zeros W/b; deterministic random
    # values here so the matmul path is actually exercised.
    weight = 0.02 * jax.random.normal(kw, (NAATOKENS, n_feat), dtype=jnp.float32)
    bias = 0.01 * jax.random.normal(kb, (NAATOKENS,), dtype=jnp.float32)

    logits = jax.block_until_ready(masked_token_network(x, weight, bias))
    assert logits.shape == (B, NAATOKENS, N * L), logits.shape
    assert logits.dtype == jnp.float32

    # Precision-matched reference (bf16 operands, f32 accumulation).
    xb = x.astype(jnp.bfloat16).astype(jnp.float32)
    wb = weight.astype(jnp.bfloat16).astype(jnp.float32)
    ref_bf16 = ref_forward(xb, wb, bias)
    assert jnp.allclose(logits, ref_bf16, atol=1e-4, rtol=1e-4), "mismatch vs bf16 ref"
    # Looser check against the pure-f32 PyTorch-equivalent forward.
    assert jnp.allclose(logits, ref_forward(x, weight, bias),
                        atol=2e-2, rtol=2e-2), "mismatch vs f32 ref"

    # ---- Test 2: multi-step grid with a non-dividing tail tile -------------
    B2, N2, L2 = 1, 3, 100            # NL = 300, not a multiple of tm=128
    kx2 = jax.random.fold_in(kx, 1)
    x2 = jax.random.normal(kx2, (B2, N2, L2, n_feat), dtype=jnp.float32)
    logits2 = jax.block_until_ready(masked_token_network(x2, weight, bias, tm=128))
    assert logits2.shape == (B2, NAATOKENS, N2 * L2), logits2.shape
    xb2 = x2.astype(jnp.bfloat16).astype(jnp.float32)
    ref2 = ref_forward(xb2, wb, bias)
    assert jnp.allclose(logits2, ref2, atol=1e-4, rtol=1e-4), "mismatch on tail tile"

    # ---- Test 3: bf16 output path (halves the dominant HBM write stream) ---
    logits_bf16 = jax.block_until_ready(
        masked_token_network(x, weight, bias, out_dtype=jnp.bfloat16))
    assert logits_bf16.dtype == jnp.bfloat16
    assert jnp.allclose(logits_bf16.astype(jnp.float32), ref_bf16,
                        atol=2e-2, rtol=2e-2), "mismatch on bf16 output"

    print("KERNEL_OK")
</pallas_src>

<mosaic_0001>
module attributes {stable_mosaic.version = 11 : i64} {
  func.func @_masked_token_kernel(%arg0: i32, %arg1: i32, %arg2: memref<1x32x32xf32, #tpu.memory_space<vmem>>, %arg3: memref<46x32xbf16, #tpu.memory_space<vmem>>, %arg4: memref<46x1xf32, #tpu.memory_space<vmem>>, %arg5: memref<1x46x32xf32, #tpu.memory_space<vmem>>) attributes {dimension_semantics = [#tpu.dimension_semantics<parallel>, #tpu.dimension_semantics<parallel>], iteration_bounds = array<i64: 2, 1>, scalar_prefetch = 0 : i64, scratch_operands = 0 : i64, tpu.core_type = #tpu.core_type<tc>, window_params = [{transform_indices = @transform_0, window_bounds = array<i64: 1, 32, 32>}, {pipeline_mode = #tpu.pipeline_mode<synchronous>, transform_indices = @transform_1, window_bounds = array<i64: 46, 32>}, {pipeline_mode = #tpu.pipeline_mode<synchronous>, transform_indices = @transform_2, window_bounds = array<i64: 46, 1>}, {transform_indices = @transform_3, window_bounds = array<i64: 1, 46, 32>}]} {
    %c0 = arith.constant 0 : index
    %c0_0 = arith.constant 0 : index
    %c0_1 = arith.constant 0 : index
    %0 = vector.load %arg2[%c0, %c0_0, %c0_1] : memref<1x32x32xf32, #tpu.memory_space<vmem>>, vector<1x32x32xf32>
    %1 = vector.shape_cast %0 : vector<1x32x32xf32> to vector<32x32xf32>
    %2 = arith.truncf %1 : vector<32x32xf32> to vector<32x32xbf16>
    %c0_2 = arith.constant 0 : index
    %c0_3 = arith.constant 0 : index
    %3 = vector.load %arg3[%c0_2, %c0_3] : memref<46x32xbf16, #tpu.memory_space<vmem>>, vector<46x32xbf16>
    %cst = arith.constant dense<0.000000e+00> : vector<46x32xf32>
    %4 = tpu.matmul %3, %2, %cst {dimension_numbers = #tpu.dot_dimension_numbers<[1], [1], [0], [0], [0, 0, 1, 0], [], []>} : vector<46x32xbf16>, vector<32x32xbf16>, vector<46x32xf32> -> vector<46x32xf32>
    %c0_4 = arith.constant 0 : index
    %c0_5 = arith.constant 0 : index
    %5 = vector.load %arg4[%c0_4, %c0_5] : memref<46x1xf32, #tpu.memory_space<vmem>>, vector<46x1xf32>
    %6 = vector.broadcast %5 : vector<46x1xf32> to vector<46x32xf32>
    %7 = arith.addf %4, %6 : vector<46x32xf32>
    %c0_6 = arith.constant 0 : index
    %c0_7 = arith.constant 0 : index
    %c0_8 = arith.constant 0 : index
    %8 = vector.load %arg5[%c0_6, %c0_7, %c0_8] : memref<1x46x32xf32, #tpu.memory_space<vmem>>, vector<1x46x32xf32>
    %9 = vector.shape_cast %8 : vector<1x46x32xf32> to vector<46x32xf32>
    %10 = vector.shape_cast %7 : vector<46x32xf32> to vector<1x46x32xf32>
    tpu.vector_store %arg5[%c0_6, %c0_7, %c0_8], %10 {strides = array<i32>} : memref<1x46x32xf32, #tpu.memory_space<vmem>>, vector<1x46x32xf32>,
    return
  }
  func.func @transform_0(%arg0: i32, %arg1: i32) -> (i32, i32, i32) {
    %c0_i32 = arith.constant 0 : i32
    %c0_i32_0 = arith.constant 0 : i32
    return %arg0, %arg1, %c0_i32 : i32, i32, i32
  }
  func.func @transform_1(%arg0: i32, %arg1: i32) -> (i32, i32) {
    %c0_i32 = arith.constant 0 : i32
    %c0_i32_0 = arith.constant 0 : i32
    %c0_i32_1 = arith.constant 0 : i32
    return %c0_i32, %c0_i32_0 : i32, i32
  }
  func.func @transform_2(%arg0: i32, %arg1: i32) -> (i32, i32) {
    %c0_i32 = arith.constant 0 : i32
    %c0_i32_0 = arith.constant 0 : i32
    %c0_i32_1 = arith.constant 0 : i32
    return %c0_i32, %c0_i32_0 : i32, i32
  }
  func.func @transform_3(%arg0: i32, %arg1: i32) -> (i32, i32, i32) {
    %c0_i32 = arith.constant 0 : i32
    %c0_i32_0 = arith.constant 0 : i32
    return %arg0, %c0_i32, %arg1 : i32, i32, i32
  }
}

</mosaic_0001>

<llo_original>
// kernel: masked_token_network.1
$region0: #{masked_token_network.1}
  #allocation0 [shape = 'u32[]', space=smem, size = 0x4, offset = 0x4, fixed_abs, tag = 'smem constant byte address 0x4 - core index']
  #allocation1 [shape = 'u32[144,128]{1,0:T(1,128)}', space=vmem, size = 0x12000, scoped, tag = 'internal scratch']
  %s0 = inlined_call_operand.vmem [shape: f32[2,32,32], index: 0, kind: input, shape index: {}]
  %s1 = inlined_call_operand.vmem [shape: bf16[46,32], index: 1, kind: input, shape index: {}]
  %s2 = inlined_call_operand.vmem [shape: f32[46,1], index: 2, kind: input, shape index: {}]
  %s3 = inlined_call_operand.vmem [shape: f32[2,46,32], index: 3, kind: output, shape index: {}]
  %s4 = sld [smem:[#allocation0]]
  $region45: #{masked_token_network.1} parent=0
    _
  %s6 = ssub.s32 1, %s4
  %s7 = scalar_select 0, %s6, %s4
  loop: start=0, step=1, limit=4
  $region2: #{masked_token_network.1} parent=0 // loop_pre_header
    _
  $region3: #{masked_token_network.1} parent=0 // loop_header
    %s9 = sphi 0, %s13
    %p10 = scmp.ge.s32.totalorder %s9, 4
    %s16 = sphi 0, %s28
    %s17 = sphi 0, %s24
    %s18 = sphi 0, %s16
    %s19 = sphi 0, %s17
    %s20 = sphi 0, %s18
    %s21 = sphi 0, %s19
    %s33 = sphi 0, %s35
    %s36 = sphi 0, %s33
    %s37 = sphi 0, %s36
    %s53 = sphi 0, %s37
    %s57 = sphi 0, %s57
    %s59 = sphi 0, %s57
    %s60 = sphi 0, %s59
    %s74 = sphi 0, %s60
    %s78 = sphi 0, %s78
    %s80 = sphi 0, %s78
    %s81 = sphi 0, %s80
    %s95 = sphi 0, %s81
    %s103 = sphi 0, %s105
    %s106 = sphi 0, %s103
    %s107 = sphi 0, %s106
    %s123 = sphi 0, %s107
  $region4: #{masked_token_network.1} parent=0 // loop_header_branch
    %12 = sbr.rel (%p10) target = $region8
  $region5: #{masked_token_network.1} parent=0 // loop_body
    %s14 = ssub.s32 %s9, 1
    %s15 = ssub.s32 %s9, 2
    %s22 = sadd.s32 1, %s17
    %p23 = scmp.ge.s32.totalorder %s22, 1
    %s24 = scalar_select %p23, 0, %s22
    %s25 = sadd.s32 1, %s16
    %s26 = scalar_select %p23, %s25, %s16
    %p27 = scmp.ge.s32.totalorder %s26, 2
    %s28 = scalar_select %p27, 0, %s26
    %s29 = ssub.s32 %s16, %s28
    %s30 = ssub.s32 %s17, %s24
    %s31 = sor.u32 %s29, %s30
    %p32 = scmp.eq.s32.totalorder %s31, 0
    %s34 = sadd.s32 %s33, 1
    %s35 = scalar_select %p32, %s33, %s34
    %p38 = pneg %p32
    %p39 = scmp.eq.s32.totalorder %s9, 1
    %p40 = por %p38, %p39
    %p41 = scmp.ne.s32.totalorder %s33, %s36
    %p42 = scmp.eq.s32.totalorder %s9, 0
    %p43 = por %p41, %p42
    %p44 = scmp.ne.s32.totalorder %s33, %s36
    %p45 = scmp.eq.s32.totalorder %s14, 1
    %p46 = por %p44, %p45
    %p47 = scmp.ne.s32.totalorder %s36, %s37
    %p48 = scmp.eq.s32.totalorder %s14, 0
    %p49 = por %p47, %p48
    %p50 = scmp.ne.s32.totalorder %s36, %s37
    %p51 = scmp.eq.s32.totalorder %s15, 1
    %p52 = por %p50, %p51
    %p54 = scmp.ne.s32.totalorder %s37, %s53
    %p55 = scmp.eq.s32.totalorder %s15, 0
    %p56 = por %p54, %p55
    %s58 = sadd.s32 %s57, 1
    %p61 = scmp.eq.s32.totalorder %s9, 1
    %p62 = scmp.ne.s32.totalorder %s57, %s59
    %p63 = scmp.eq.s32.totalorder %s9, 0
    %p64 = por %p62, %p63
    %p65 = scmp.ne.s32.totalorder %s57, %s59
    %p66 = scmp.eq.s32.totalorder %s14, 1
    %p67 = por %p65, %p66
    %p68 = scmp.ne.s32.totalorder %s59, %s60
    %p69 = scmp.eq.s32.totalorder %s14, 0
    %p70 = por %p68, %p69
    %p71 = scmp.ne.s32.totalorder %s59, %s60
    %p72 = scmp.eq.s32.totalorder %s15, 1
    %p73 = por %p71, %p72
    %p75 = scmp.ne.s32.totalorder %s60, %s74
    %p76 = scmp.eq.s32.totalorder %s15, 0
    %p77 = por %p75, %p76
    %s79 = sadd.s32 %s78, 1
    %p82 = scmp.eq.s32.totalorder %s9, 1
    %p83 = scmp.ne.s32.totalorder %s78, %s80
    %p84 = scmp.eq.s32.totalorder %s9, 0
    %p85 = por %p83, %p84
    %p86 = scmp.ne.s32.totalorder %s78, %s80
    %p87 = scmp.eq.s32.totalorder %s14, 1
    %p88 = por %p86, %p87
    %p89 = scmp.ne.s32.totalorder %s80, %s81
    %p90 = scmp.eq.s32.totalorder %s14, 0
    %p91 = por %p89, %p90
    %p92 = scmp.ne.s32.totalorder %s80, %s81
    %p93 = scmp.eq.s32.totalorder %s15, 1
    %p94 = por %p92, %p93
    %p96 = scmp.ne.s32.totalorder %s81, %s95
    %p97 = scmp.eq.s32.totalorder %s15, 0
    %p98 = por %p96, %p97
    %s99 = ssub.s32 %s16, %s28
    %s100 = ssub.s32 %s17, %s24
    %s101 = sor.u32 %s99, %s100
    %p102 = scmp.eq.s32.totalorder %s101, 0
    %s104 = sadd.s32 %s103, 1
    %s105 = scalar_select %p102, %s103, %s104
    %p108 = pneg %p102
    %p109 = scmp.eq.s32.totalorder %s9, 1
    %p110 = por %p108, %p109
    %p111 = scmp.ne.s32.totalorder %s103, %s106
    %p112 = scmp.eq.s32.totalorder %s9, 0
    %p113 = por %p111, %p112
    %p114 = scmp.ne.s32.totalorder %s103, %s106
    %p115 = scmp.eq.s32.totalorder %s14, 1
    %p116 = por %p114, %p115
    %p117 = scmp.ne.s32.totalorder %s106, %s107
    %p118 = scmp.eq.s32.totalorder %s14, 0
    %p119 = por %p117, %p118
    %p120 = scmp.ne.s32.totalorder %s106, %s107
    %p121 = scmp.eq.s32.totalorder %s15, 1
    %p122 = por %p120, %p121
    %p124 = scmp.ne.s32.totalorder %s107, %s123
    %p125 = scmp.eq.s32.totalorder %s15, 0
    %p126 = por %p124, %p125
    %p127 = scmp.le.s32.totalorder 1, %s9
    %p128 = scmp.lt.s32.totalorder %s9, 3
    %p129 = pnand %p127, %p128
    %p130 = pneg %p129
    // Predicated region
    $region9: #{masked_token_network.1} parent=5 // pred_check
      _
    $region10: #{masked_token_network.1} parent=5 // pred_check_branch
      %132 = sbr.rel (%p129) target = $region12
    $region11: #{masked_token_network.1} parent=5 // pred_region
      %s133 = ssub.s32 %s9, 1
      // Predicated region
      $region13: #{masked_token_network.1} parent=11 // pred_check
        %p134 = pneg %p70
      $region14: #{masked_token_network.1} parent=11 // pred_check_branch
        %136 = sbr.rel (%p134) target = $region16
      $region15: #{masked_token_network.1} parent=11 // pred_region
        _
      $region16: #{masked_token_network.1} parent=11 // pred_fallthru
        _
      // Predicated region
      $region17: #{masked_token_network.1} parent=11 // pred_check
        %p137 = pneg %p91
      $region18: #{masked_token_network.1} parent=11 // pred_check_branch
        %139 = sbr.rel (%p137) target = $region20
      $region19: #{masked_token_network.1} parent=11 // pred_region
        _
      $region20: #{masked_token_network.1} parent=11 // pred_fallthru
        _
    $region12: #{masked_token_network.1} parent=5 // pred_fallthru
      _
    %p140 = scmp.lt.s32.totalorder %s9, 2
    // Predicated region
    $region21: #{masked_token_network.1} parent=5 // pred_check
      %p141 = pneg %p140
    $region22: #{masked_token_network.1} parent=5 // pred_check_branch
      %143 = sbr.rel (%p141) target = $region24
    $region23: #{masked_token_network.1} parent=5 // pred_region
      // Predicated region
      $region25: #{masked_token_network.1} parent=23 // pred_check
        %p144 = pneg %p43
      $region26: #{masked_token_network.1} parent=23 // pred_check_branch
        %146 = sbr.rel (%p144) target = $region28
      $region27: #{masked_token_network.1} parent=23 // pred_region
        %s147 = smul.u32 4, %s17
        %p148 = scmp.lt.s32.totalorder %s16, 1
        %s149 = scalar_select %p148, %s16, 1
        %p150 = scmp.lt.s32.totalorder %s147, 3
        %s151 = scalar_select %p150, %s147, 3
        %s152 = smul.addr %s149, 4
        %s153 = sadd.s32 %s151, %s152
        %s154 = smul.addr %s153, 8
        %s155 = scalar_lea.vmem %s0, %s154
        %s156 = smul.u32 4, %s17
      $region28: #{masked_token_network.1} parent=23 // pred_fallthru
        _
    $region24: #{masked_token_network.1} parent=5 // pred_fallthru
      _
    %p157 = scmp.le.s32.totalorder 1, %s9
    %p158 = scmp.lt.s32.totalorder %s9, 3
    %p159 = pnand %p157, %p158
    %p160 = pneg %p159
    // Predicated region
    $region29: #{masked_token_network.1} parent=5 // pred_check
      _
    $region30: #{masked_token_network.1} parent=5 // pred_check_branch
      %162 = sbr.rel (%p159) target = $region32
    $region31: #{masked_token_network.1} parent=5 // pred_region
      %s163 = ssub.s32 %s9, 1
      %s164 = smul.u32 4, %s19
      %p165 = scmp.lt.s32.totalorder %s18, 1
      %s166 = scalar_select %p165, %s18, 1
      %p167 = scmp.lt.s32.totalorder %s164, 3
      %s168 = scalar_select %p167, %s164, 3
      %s169 = smul.addr %s166, 4
      %s170 = sadd.s32 %s168, %s169
      %s171 = smul.addr %s170, 8
      %s172 = scalar_lea.vmem %s0, %s171
      %p173 = pneg %p49
      %p174 = pneg %p46
      %p175 = pneg %p70
      %p176 = pneg %p67
      %p177 = pneg %p91
      %p178 = pneg %p88
      %p179 = pneg %p119
      %p180 = pneg %p116
      %p181 = scmp.lt.s32.totalorder %s18, 1
      %s182 = scalar_select %p181, %s18, 1
      %p183 = scmp.lt.s32.totalorder %s19, 0
      %s184 = scalar_select %p183, %s19, 0
      %s185 = smul.addr %s182, 6
      %s186 = sadd.s32 %s184, %s185
      %s187 = smul.addr %s186, 8
      %s188 = scalar_lea.vmem %s3, %s187
      %s189 = smul.u32 4, %s19
      %p190 = scmp.lt.s32.totalorder %s18, 1
      %s191 = scalar_select %p190, %s18, 1
      %p192 = scmp.lt.s32.totalorder %s189, 3
      %s193 = scalar_select %p192, %s189, 3
      %s194 = smul.addr %s191, 4
      %s195 = sadd.s32 %s193, %s194
      %s196 = smul.addr %s195, 8
      %s197 = scalar_lea.vmem %s0, %s196
      %s198 = smul.u32 4, %s19
      %p199 = scmp.lt.s32.totalorder %s18, 1
      %s200 = scalar_select %p199, %s18, 1
      %p201 = scmp.lt.s32.totalorder %s19, 0
      %s202 = scalar_select %p201, %s19, 0
      %s203 = smul.addr %s200, 6
      %s204 = sadd.s32 %s202, %s203
      %s205 = smul.addr %s204, 8
      %s206 = scalar_lea.vmem %s3, %s205
      %v208 = vld [vmem:[%s197] sm:$0xff]
      %v209 = vld [vmem:[%s197 + $0x8] sm:$0xff]
      %v210 = vld [vmem:[%s197 + $0x10] sm:$0xff]
      %v211 = vld [vmem:[%s197 + $0x18] sm:$0xff]
      %v212 = vpack.c.bf16 %v209, %v208
      %v213 = vpack.c.bf16 %v211, %v210
      %v214 = vld [vmem:[%s1] sm:$0xf]
      %v215 = vld [vmem:[%s1 + $0x4] sm:$0xf]
      %v216 = vld [vmem:[%s1 + $0x8] sm:$0xf]
      %v217 = vld [vmem:[%s1 + $0xc] sm:$0xf]
      %v218 = vld [vmem:[%s1 + $0x10] sm:$0xf]
      %v219 = vld [vmem:[%s1 + $0x14] sm:$0x7]
      %v220 = vld [vmem:[%s2] sm:$0xff]
      %v221 = vld [vmem:[%s2 + $0x8] sm:$0xff]
      %v222 = vld [vmem:[%s2 + $0x10] sm:$0xff]
      %v223 = vld [vmem:[%s2 + $0x18] sm:$0xff]
      %v224 = vld [vmem:[%s2 + $0x20] sm:$0xff]
      %v225 = vld [vmem:[%s2 + $0x28] sm:$0x3f]
      %227 = vset.pattern.permute.xlu0 0
      %228 = vperm.xlu0 %227, %v220
      %v229 = vpop.permute.xlu0 %228
      %232 = vset.pattern.permute.xlu0 0
      %233 = vperm.xlu0 %232, %v221
      %v234 = vpop.permute.xlu0 %233
      %237 = vset.pattern.permute.xlu0 0
      %238 = vperm.xlu0 %237, %v222
      %v239 = vpop.permute.xlu0 %238
      %242 = vset.pattern.permute.xlu0 0
      %243 = vperm.xlu0 %242, %v223
      %v244 = vpop.permute.xlu0 %243
      %247 = vset.pattern.permute.xlu0 0
      %248 = vperm.xlu0 %247, %v224
      %v249 = vpop.permute.xlu0 %248
      %252 = vset.pattern.permute.xlu0 0
      %253 = vperm.xlu0 %252, %v225
      %v254 = vpop.permute.xlu0 %253
      %v262 = vunpack.c.l.b16 %v214
      %v263 = vunpack.c.l.b16 %v215
      %v264 = vunpack.c.l.b16 %v216
      %v265 = vunpack.c.l.b16 %v217
      %v266 = vunpack.c.l.b16 %v218
      %v267 = vunpack.c.l.b16 %v219
      %v268 = vpack.c.b16 %v263, %v262
      %v269 = vpack.c.b16 %v265, %v264
      %v270 = vpack.c.b16 %v267, %v266
      %vm271 = vcmask 261120
      %v273 = vsel %vm271, %v268, 0
      %v276 = vsel %vm271, %v269, 0
      %v279 = vsel %vm271, %v270, 0
      %v282 = vsel %vm271, %v212, 0
      %v285 = vsel %vm271, %v213, 0
      %287 = vmatprep.subr.bf16.mxu0 0
      %288 = vmatpush1.bf16.xpose.msra.mxu0 %v282
      %289 = vmatprep.subr.bf16.mxu0 0
      %290 = vmatpush1.bf16.xpose.msra.mxu0 %v285
      %291 = vmatprep.subr.bf16.mxu0 0
      %292 = vmatpush1.bf16.xpose.msra.mxu0 0
      %293 = vmatprep.subr.bf16.mxu0 0
      %294 = vmatpush1.bf16.xpose.msra.mxu0 0
      %295 = vmatprep.subr.bf16.mxu0 0
      %296 = vmatpush1.bf16.xpose.msra.mxu0 0
      %297 = vmatprep.subr.bf16.mxu0 0
      %298 = vmatpush1.bf16.xpose.msra.mxu0 0
      %299 = vmatprep.subr.bf16.mxu0 0
      %300 = vmatpush1.bf16.xpose.msra.mxu0 0
      %301 = vmatprep.subr.bf16.mxu0 0
      %302 = vmatpush1.bf16.xpose.msra.mxu0 0
      %303 = vmatprep.subr.bf16.mxu0 0
      %304 = vmatpush1.bf16.xpose.msra.mxu0 0
      %305 = vmatprep.subr.bf16.mxu0 0
      %306 = vmatpush1.bf16.xpose.msra.mxu0 0
      %307 = vmatprep.subr.bf16.mxu0 0
      %308 = vmatpush1.bf16.xpose.msra.mxu0 0
      %309 = vmatprep.subr.bf16.mxu0 0
      %310 = vmatpush1.bf16.xpose.msra.mxu0 0
      %311 = vmatprep.subr.bf16.mxu0 0
      %312 = vmatpush1.bf16.xpose.msra.mxu0 0
      %313 = vmatprep.subr.bf16.mxu0 0
      %314 = vmatpush1.bf16.xpose.msra.mxu0 0
      %315 = vmatprep.subr.bf16.mxu0 0
      %316 = vmatpush1.bf16.xpose.msra.mxu0 0
      %317 = vmatprep.subr.bf16.mxu0 0
      %318 = vmatpush1.bf16.xpose.msra.mxu0 0
      %319 = vmatprep.mubr.bf16.mxu0 0
      %320 = vmatmul.mubr.bf16.gmra.mrb[0].mxu0 %v273
      %v321 = vpop.f32.mrb[0].mxu0
      %v322 = vadd.f32 %v229, %v321
      %v323 = vpop.f32.mrb[0].mxu0
      %v324 = vpop.f32.mrb[0].mxu0
      %v325 = vadd.f32 %v234, %v324
      %v326 = vpop.f32.mrb[0].mxu0
      %327 = vmatprep.mubr.bf16.mxu0 0
      %328 = vmatmul.mubr.bf16.gmra.mrb[0].mxu0 %v276
      %v329 = vpop.f32.mrb[0].mxu0
      %v330 = vadd.f32 %v239, %v329
      %v331 = vpop.f32.mrb[0].mxu0
      %v332 = vpop.f32.mrb[0].mxu0
      %v333 = vadd.f32 %v244, %v332
      %v334 = vpop.f32.mrb[0].mxu0
      %335 = vmatprep.mubr.bf16.mxu0 0
      %336 = vmatmul.mubr.bf16.gmra.mrb[0].mxu0 %v279
      %v337 = vpop.f32.mrb[0].mxu0
      %v338 = vadd.f32 %v249, %v337
      %v339 = vpop.f32.mrb[0].mxu0
      %v340 = vpop.f32.mrb[0].mxu0
      %v341 = vadd.f32 %v254, %v340
      %v342 = vpop.f32.mrb[0].mxu0
      %343 = vdwg.mxu0
      %344 = vst.msk [vmem:[%s206] sm:$0xff] %vm271, %v322
      %345 = vst.msk [vmem:[%s206 + $0x8] sm:$0xff] %vm271, %v325
      %346 = vst.msk [vmem:[%s206 + $0x10] sm:$0xff] %vm271, %v330
      %347 = vst.msk [vmem:[%s206 + $0x18] sm:$0xff] %vm271, %v333
      %348 = vst.msk [vmem:[%s206 + $0x20] sm:$0xff] %vm271, %v338
      %vm349 = vcmask 259072
      %350 = vst.msk [vmem:[%s206 + $0x28] sm:$0x3f] %vm349, %v341
      %p351 = scmp.lt.s32.totalorder %s18, 1
      %s352 = scalar_select %p351, %s18, 1
      %p353 = scmp.lt.s32.totalorder %s19, 0
      %s354 = scalar_select %p353, %s19, 0
      %s355 = smul.addr %s352, 6
      %s356 = sadd.s32 %s354, %s355
      %s357 = smul.addr %s356, 8
      %s358 = scalar_lea.vmem %s3, %s357
      // Predicated region
      $region33: #{masked_token_network.1} parent=31 // pred_check
        %p359 = pneg %p116
      $region34: #{masked_token_network.1} parent=31 // pred_check_branch
        %361 = sbr.rel (%p359) target = $region36
      $region35: #{masked_token_network.1} parent=31 // pred_region
        _
      $region36: #{masked_token_network.1} parent=31 // pred_fallthru
        _
    $region32: #{masked_token_network.1} parent=5 // pred_fallthru
      _
    %p362 = scmp.le.s32.totalorder 2, %s9
    // Predicated region
    $region37: #{masked_token_network.1} parent=5 // pred_check
      %p363 = pneg %p362
    $region38: #{masked_token_network.1} parent=5 // pred_check_branch
      %365 = sbr.rel (%p363) target = $region40
    $region39: #{masked_token_network.1} parent=5 // pred_region
      %s366 = ssub.s32 %s9, 2
      // Predicated region
      $region41: #{masked_token_network.1} parent=39 // pred_check
        %p367 = pneg %p122
      $region42: #{masked_token_network.1} parent=39 // pred_check_branch
        %369 = sbr.rel (%p367) target = $region44
      $region43: #{masked_token_network.1} parent=39 // pred_region
        %p370 = scmp.lt.s32.totalorder %s20, 1
        %s371 = scalar_select %p370, %s20, 1
        %p372 = scmp.lt.s32.totalorder %s21, 0
        %s373 = scalar_select %p372, %s21, 0
        %s374 = smul.addr %s371, 6
        %s375 = sadd.s32 %s373, %s374
        %s376 = smul.addr %s375, 8
        %s377 = scalar_lea.vmem %s3, %s376
      $region44: #{masked_token_network.1} parent=39 // pred_fallthru
        _
    $region40: #{masked_token_network.1} parent=5 // pred_fallthru
      _
  $region6: #{masked_token_network.1} parent=0 // loop_footer
    %s13 = sadd.s32 1, %s9
  $region7: #{masked_token_network.1} parent=0 // loop_footer_branch
    %8 = sbr.rel target = $region3
  $region8: #{masked_token_network.1} parent=0 // loop_exit
    _

</llo_original>
